<compile_context>
chip_gen: v7x
topology: tpu7x:2x2x1
jax: 0.10.0
libtpu: 0.0.40
codegen_flags: <defaults>
</compile_context>

<pallas_src>
import functools

import jax
import jax.numpy as jnp
from jax.experimental import pallas as pl
from jax.experimental.pallas import tpu as pltpu

_SUBLANE = 8


def _round_up(x, m):
    return ((x + m - 1) // m) * m


def _mlp_policy_kernel(n_layers, obs_ref, *refs):
    """Full MLP (mean head only) for one batch tile.

    refs layout: [W0, b0, W1, b1, ..., W_L, b_L, mean_out]
    with L = n_layers hidden [Linear -> tanh] layers followed by the output
    Linear. Weights arrive in bf16, biases in f32; all accumulation is f32.
    """
    n_linear = n_layers + 1
    param_refs = refs[: 2 * n_linear]
    mean_ref = refs[2 * n_linear]

    h = obs_ref[...]  # (tile, ob_dim), bf16
    # Hidden layers: Linear -> tanh, unrolled at trace time (params are tiny
    # and resident in VMEM via constant index maps).
    for layer in range(n_layers):
        w = param_refs[2 * layer][...]        # bf16 (in, out)
        b = param_refs[2 * layer + 1][...]    # f32  (1, out)
        z = jnp.dot(h, w, preferred_element_type=jnp.float32) + b
        h = jnp.tanh(z).astype(w.dtype)       # back to bf16 for the next MXU pass
    # Output head: Linear, identity activation, f32 result written unpadded.
    w_out = param_refs[2 * n_layers][...]
    b_out = param_refs[2 * n_layers + 1][...]
    mean_ref[...] = jnp.dot(h, w_out, preferred_element_type=jnp.float32) + b_out


def mlp_policy_forward(obs, weights, biases, logstd, *, batch_tile=4096,
                       compute_dtype=jnp.bfloat16):
    """Pallas forward of MLPStochasticPolicy (continuous / Normal case).

    Args:
      obs:     (B, ob_dim) array
      weights: list of (in, out) matrices, len = n_layers + 1
      biases:  list of (1, out) (or (out,)) rows, len = n_layers + 1
      logstd:  (ac_dim,) array
    Returns:
      mean: (B, ac_dim) float32
      std:  (ac_dim,)   float32   (broadcasts against mean, like torch Normal)
    """
    obs = jnp.asarray(obs)
    B, ob_dim = obs.shape
    ac_dim = int(weights[-1].shape[1])
    n_layers = len(weights) - 1

    # --- Batch tile selection ------------------------------------------------
    # Big tiles amortize the fixed per-grid-step cost (the MLP is tiny, so the
    # kernel is step-overhead / HBM bound, not VMEM or MXU bound), but cap the
    # tile so the grid keeps >= 4 steps: on v7x the "parallel" axis is sharded
    # across the 2 TensorCores and a grid of (1,) would leave one core idle.
    tile = min(int(batch_tile), _round_up(pl.cdiv(B, 4), _SUBLANE))
    tile = max(_SUBLANE, _round_up(tile, _SUBLANE))
    grid = (pl.cdiv(B, tile),)  # ragged last block: OOB rows are dropped by Pallas

    # --- Inputs: bf16 obs/weights (halves HBM read), f32 biases --------------
    # (Under jit the obs cast fuses with the upstream producer of obs.)
    obs_in = obs.astype(compute_dtype)
    in_specs = [pl.BlockSpec((tile, ob_dim), lambda i: (i, 0))]
    param_args = []
    for w, b in zip(weights, biases):
        w = jnp.asarray(w).astype(compute_dtype)
        b = jnp.asarray(b, jnp.float32).reshape(1, -1)
        in_specs.append(pl.BlockSpec(w.shape, lambda i: (0, 0)))
        in_specs.append(pl.BlockSpec(b.shape, lambda i: (0, 0)))
        param_args.extend([w, b])

    # --- Output: unpadded (B, ac_dim) f32, lane padding only inside VMEM -----
    out_specs = pl.BlockSpec((tile, ac_dim), lambda i: (i, 0))
    out_shape = jax.ShapeDtypeStruct((B, ac_dim), jnp.float32)

    # Advisory cost estimate so XLA schedules this small call sensibly.
    weight_args = param_args[0::2]
    param_bytes = sum(int(p.size) * p.dtype.itemsize for p in param_args)
    cost = pl.CostEstimate(
        flops=2 * B * sum(int(w.size) for w in weight_args),
        transcendentals=B * sum(int(w.shape[1]) for w in weight_args[:-1]),
        bytes_accessed=int(obs_in.size) * obs_in.dtype.itemsize
        + B * ac_dim * 4
        + param_bytes,
    )

    kernel = functools.partial(_mlp_policy_kernel, n_layers)
    mean = pl.pallas_call(
        kernel,
        grid=grid,
        in_specs=in_specs,
        out_specs=out_specs,
        out_shape=out_shape,
        compiler_params=pltpu.CompilerParams(
            dimension_semantics=("parallel",),
        ),
        cost_estimate=cost,
    )(obs_in, *param_args)

    # std = exp(logstd): tiny per-parameter constant; computed once here, not
    # per grid step inside the kernel.
    std = jnp.exp(jnp.asarray(logstd, jnp.float32).reshape(-1))
    # TODO(synk): torch returns a Normal(mean, std) Distribution object; we
    # return its parameters (sampling / log_prob are not part of forward()).
    return mean, std


def _reference_forward(obs, weights, biases, logstd):
    h = jnp.asarray(obs, jnp.float32)
    for w, b in zip(weights[:-1], biases[:-1]):
        h = jnp.tanh(h @ w + b.reshape(1, -1))
    mean = h @ weights[-1] + biases[-1].reshape(1, -1)
    std = jnp.exp(jnp.asarray(logstd, jnp.float32).reshape(-1))
    return mean, std


if __name__ == "__main__":
    # Module hyperparameters (continuous policy, discrete=False).
    ac_dim = 4
    ob_dim = 16
    n_layers = 2
    size = 32
    batch = 20  # deliberately NOT a multiple of the tile -> exercises the ragged block

    key = jax.random.PRNGKey(0)
    keys = jax.random.split(key, 2 * (n_layers + 1) + 1)

    # Deterministic parameter init (shapes follow ptu.build_mlp).
    dims = [ob_dim] + [size] * n_layers + [ac_dim]
    weights, biases = [], []
    kidx = 0
    for din, dout in zip(dims[:-1], dims[1:]):
        scale = 1.0 / jnp.sqrt(jnp.float32(din))
        weights.append(
            jax.random.uniform(keys[kidx], (din, dout), jnp.float32, -scale, scale)
        )
        kidx += 1
        biases.append(
            jax.random.uniform(keys[kidx], (1, dout), jnp.float32, -scale, scale)
        )
        kidx += 1
    # self.logstd = nn.Parameter(torch.zeros(ac_dim)) -> zeros, deterministic.
    logstd = jnp.zeros((ac_dim,), dtype=jnp.float32)

    obs = jax.random.normal(keys[kidx], (batch, ob_dim), dtype=jnp.float32)

    mean, std = mlp_policy_forward(obs, weights, biases, logstd)
    jax.block_until_ready((mean, std))

    mean_ref, std_ref = _reference_forward(obs, weights, biases, logstd)
    assert mean.shape == (batch, ac_dim)
    assert std.shape == (ac_dim,)
    # bf16 inputs on the MXU: allow ~1% deviation vs. the pure-f32 reference.
    assert jnp.allclose(mean, mean_ref, atol=2e-2, rtol=2e-2)
    assert jnp.allclose(std, std_ref, atol=1e-6, rtol=1e-6)

    print("KERNEL_OK")
</pallas_src>

<mosaic_0001>
module attributes {stable_mosaic.version = 11 : i64} {
  func.func @_mlp_policy_kernel(%arg0: i32, %arg1: memref<8x16xbf16, #tpu.memory_space<vmem>>, %arg2: memref<16x32xbf16, #tpu.memory_space<vmem>>, %arg3: memref<1x32xf32, #tpu.memory_space<vmem>>, %arg4: memref<32x32xbf16, #tpu.memory_space<vmem>>, %arg5: memref<1x32xf32, #tpu.memory_space<vmem>>, %arg6: memref<32x4xbf16, #tpu.memory_space<vmem>>, %arg7: memref<1x4xf32, #tpu.memory_space<vmem>>, %arg8: memref<8x4xf32, #tpu.memory_space<vmem>>) attributes {dimension_semantics = [#tpu.dimension_semantics<parallel>], iteration_bounds = array<i64: 3>, scalar_prefetch = 0 : i64, scratch_operands = 0 : i64, tpu.core_type = #tpu.core_type<tc>, window_params = [{transform_indices = @transform_0, window_bounds = array<i64: 8, 16>}, {pipeline_mode = #tpu.pipeline_mode<synchronous>, transform_indices = @transform_1, window_bounds = array<i64: 16, 32>}, {pipeline_mode = #tpu.pipeline_mode<synchronous>, transform_indices = @transform_2, window_bounds = array<i64: 1, 32>}, {pipeline_mode = #tpu.pipeline_mode<synchronous>, transform_indices = @transform_3, window_bounds = array<i64: 32, 32>}, {pipeline_mode = #tpu.pipeline_mode<synchronous>, transform_indices = @transform_4, window_bounds = array<i64: 1, 32>}, {pipeline_mode = #tpu.pipeline_mode<synchronous>, transform_indices = @transform_5, window_bounds = array<i64: 32, 4>}, {pipeline_mode = #tpu.pipeline_mode<synchronous>, transform_indices = @transform_6, window_bounds = array<i64: 1, 4>}, {transform_indices = @transform_7, window_bounds = array<i64: 8, 4>}]} {
    %c0 = arith.constant 0 : index
    %c0_0 = arith.constant 0 : index
    %0 = vector.load %arg1[%c0, %c0_0] : memref<8x16xbf16, #tpu.memory_space<vmem>>, vector<8x16xbf16>
    %c0_1 = arith.constant 0 : index
    %c0_2 = arith.constant 0 : index
    %1 = vector.load %arg2[%c0_1, %c0_2] : memref<16x32xbf16, #tpu.memory_space<vmem>>, vector<16x32xbf16>
    %c0_3 = arith.constant 0 : index
    %c0_4 = arith.constant 0 : index
    %2 = vector.load %arg3[%c0_3, %c0_4] : memref<1x32xf32, #tpu.memory_space<vmem>>, vector<1x32xf32>
    %cst = arith.constant dense<0.000000e+00> : vector<8x32xf32>
    %3 = tpu.matmul %0, %1, %cst {dimension_numbers = #tpu.dot_dimension_numbers<[1], [0], [0], [1], [0, 0, 1, 1], [], []>} : vector<8x16xbf16>, vector<16x32xbf16>, vector<8x32xf32> -> vector<8x32xf32>
    %4 = vector.broadcast %2 : vector<1x32xf32> to vector<8x32xf32>
    %5 = arith.addf %3, %4 : vector<8x32xf32>
    %6 = math.tanh %5 : vector<8x32xf32>
    %7 = arith.truncf %6 : vector<8x32xf32> to vector<8x32xbf16>
    %c0_5 = arith.constant 0 : index
    %c0_6 = arith.constant 0 : index
    %8 = vector.load %arg4[%c0_5, %c0_6] : memref<32x32xbf16, #tpu.memory_space<vmem>>, vector<32x32xbf16>
    %c0_7 = arith.constant 0 : index
    %c0_8 = arith.constant 0 : index
    %9 = vector.load %arg5[%c0_7, %c0_8] : memref<1x32xf32, #tpu.memory_space<vmem>>, vector<1x32xf32>
    %cst_9 = arith.constant dense<0.000000e+00> : vector<8x32xf32>
    %10 = tpu.matmul %7, %8, %cst_9 {dimension_numbers = #tpu.dot_dimension_numbers<[1], [0], [0], [1], [0, 0, 1, 1], [], []>} : vector<8x32xbf16>, vector<32x32xbf16>, vector<8x32xf32> -> vector<8x32xf32>
    %11 = vector.broadcast %9 : vector<1x32xf32> to vector<8x32xf32>
    %12 = arith.addf %10, %11 : vector<8x32xf32>
    %13 = math.tanh %12 : vector<8x32xf32>
    %14 = arith.truncf %13 : vector<8x32xf32> to vector<8x32xbf16>
    %c0_10 = arith.constant 0 : index
    %c0_11 = arith.constant 0 : index
    %15 = vector.load %arg6[%c0_10, %c0_11] : memref<32x4xbf16, #tpu.memory_space<vmem>>, vector<32x4xbf16>
    %c0_12 = arith.constant 0 : index
    %c0_13 = arith.constant 0 : index
    %16 = vector.load %arg7[%c0_12, %c0_13] : memref<1x4xf32, #tpu.memory_space<vmem>>, vector<1x4xf32>
    %cst_14 = arith.constant dense<0.000000e+00> : vector<8x4xf32>
    %17 = tpu.matmul %14, %15, %cst_14 {dimension_numbers = #tpu.dot_dimension_numbers<[1], [0], [0], [1], [0, 0, 1, 1], [], []>} : vector<8x32xbf16>, vector<32x4xbf16>, vector<8x4xf32> -> vector<8x4xf32>
    %18 = vector.broadcast %16 : vector<1x4xf32> to vector<8x4xf32>
    %19 = arith.addf %17, %18 : vector<8x4xf32>
    %c0_15 = arith.constant 0 : index
    %c0_16 = arith.constant 0 : index
    %20 = vector.load %arg8[%c0_15, %c0_16] : memref<8x4xf32, #tpu.memory_space<vmem>>, vector<8x4xf32>
    tpu.vector_store %arg8[%c0_15, %c0_16], %19 {strides = array<i32>} : memref<8x4xf32, #tpu.memory_space<vmem>>, vector<8x4xf32>,
    return
  }
  func.func @transform_0(%arg0: i32) -> (i32, i32) {
    %c0_i32 = arith.constant 0 : i32
    %c0_i32_0 = arith.constant 0 : i32
    return %arg0, %c0_i32 : i32, i32
  }
  func.func @transform_1(%arg0: i32) -> (i32, i32) {
    %c0_i32 = arith.constant 0 : i32
    %c0_i32_0 = arith.constant 0 : i32
    %c0_i32_1 = arith.constant 0 : i32
    return %c0_i32, %c0_i32_0 : i32, i32
  }
  func.func @transform_2(%arg0: i32) -> (i32, i32) {
    %c0_i32 = arith.constant 0 : i32
    %c0_i32_0 = arith.constant 0 : i32
    %c0_i32_1 = arith.constant 0 : i32
    return %c0_i32, %c0_i32_0 : i32, i32
  }
  func.func @transform_3(%arg0: i32) -> (i32, i32) {
    %c0_i32 = arith.constant 0 : i32
    %c0_i32_0 = arith.constant 0 : i32
    %c0_i32_1 = arith.constant 0 : i32
    return %c0_i32, %c0_i32_0 : i32, i32
  }
  func.func @transform_4(%arg0: i32) -> (i32, i32) {
    %c0_i32 = arith.constant 0 : i32
    %c0_i32_0 = arith.constant 0 : i32
    %c0_i32_1 = arith.constant 0 : i32
    return %c0_i32, %c0_i32_0 : i32, i32
  }
  func.func @transform_5(%arg0: i32) -> (i32, i32) {
    %c0_i32 = arith.constant 0 : i32
    %c0_i32_0 = arith.constant 0 : i32
    %c0_i32_1 = arith.constant 0 : i32
    return %c0_i32, %c0_i32_0 : i32, i32
  }
  func.func @transform_6(%arg0: i32) -> (i32, i32) {
    %c0_i32 = arith.constant 0 : i32
    %c0_i32_0 = arith.constant 0 : i32
    %c0_i32_1 = arith.constant 0 : i32
    return %c0_i32, %c0_i32_0 : i32, i32
  }
  func.func @transform_7(%arg0: i32) -> (i32, i32) {
    %c0_i32 = arith.constant 0 : i32
    %c0_i32_0 = arith.constant 0 : i32
    return %arg0, %c0_i32 : i32, i32
  }
}

</mosaic_0001>

<llo_original>
// kernel: tpu_custom_call.1
$region0: #{tpu_custom_call.1}
  #allocation0 [shape = 'u32[]', space=smem, size = 0x4, offset = 0x4, fixed_abs, tag = 'smem constant byte address 0x4 - core index']
  #allocation1 [shape = 'u32[144,128]{1,0:T(1,128)}', space=vmem, size = 0x12000, scoped, tag = 'internal scratch']
  %s0 = inlined_call_operand.vmem [shape: bf16[20,16], index: 0, kind: input, shape index: {}]
  %s1 = inlined_call_operand.vmem [shape: bf16[16,32], index: 1, kind: input, shape index: {}]
  %s2 = inlined_call_operand.vmem [shape: f32[1,32], index: 2, kind: input, shape index: {}]
  %s3 = inlined_call_operand.vmem [shape: bf16[32,32], index: 3, kind: input, shape index: {}]
  %s4 = inlined_call_operand.vmem [shape: f32[1,32], index: 4, kind: input, shape index: {}]
  %s5 = inlined_call_operand.vmem [shape: bf16[32,4], index: 5, kind: input, shape index: {}]
  %s6 = inlined_call_operand.vmem [shape: f32[1,4], index: 6, kind: input, shape index: {}]
  %s7 = inlined_call_operand.vmem [shape: f32[20,4], index: 7, kind: output, shape index: {}]
  %s8 = sld [smem:[#allocation0]]
  $region61: #{tpu_custom_call.1} parent=0
    _
  %s10 = ssub.s32 1, %s8
  %s11 = scalar_select 0, %s10, %s8
  loop: start=0, step=1, limit=5
  $region2: #{tpu_custom_call.1} parent=0 // loop_pre_header
    _
  $region3: #{tpu_custom_call.1} parent=0 // loop_header
    %s13 = sphi 0, %s17
    %p14 = scmp.ge.s32.totalorder %s13, 5
    %s23 = sphi 0, %s25
    %s26 = sphi 0, %s23
    %s27 = sphi 0, %s26
    %s43 = sphi 0, %s27
    %s47 = sphi 0, %s47
    %s49 = sphi 0, %s47
    %s50 = sphi 0, %s49
    %s64 = sphi 0, %s50
    %s68 = sphi 0, %s68
    %s70 = sphi 0, %s68
    %s71 = sphi 0, %s70
    %s85 = sphi 0, %s71
    %s89 = sphi 0, %s89
    %s91 = sphi 0, %s89
    %s92 = sphi 0, %s91
    %s106 = sphi 0, %s92
    %s110 = sphi 0, %s110
    %s112 = sphi 0, %s110
    %s113 = sphi 0, %s112
    %s127 = sphi 0, %s113
    %s131 = sphi 0, %s131
    %s133 = sphi 0, %s131
    %s134 = sphi 0, %s133
    %s148 = sphi 0, %s134
    %s152 = sphi 0, %s152
    %s154 = sphi 0, %s152
    %s155 = sphi 0, %s154
    %s169 = sphi 0, %s155
    %s175 = sphi 0, %s177
    %s178 = sphi 0, %s175
    %s179 = sphi 0, %s178
    %s195 = sphi 0, %s179
  $region4: #{tpu_custom_call.1} parent=0 // loop_header_branch
    %16 = sbr.rel (%p14) target = $region8
  $region5: #{tpu_custom_call.1} parent=0 // loop_body
    %s18 = ssub.s32 %s13, 1
    %s19 = ssub.s32 %s13, 2
    %s20 = sadd.s32 %s13, 1
    %s21 = ssub.s32 %s13, %s20
    %p22 = scmp.eq.s32.totalorder %s21, 0
    %s24 = sadd.s32 %s23, 1
    %s25 = scalar_select %p22, %s23, %s24
    %p28 = pneg %p22
    %p29 = scmp.eq.s32.totalorder %s13, 2
    %p30 = por %p28, %p29
    %p31 = scmp.ne.s32.totalorder %s23, %s26
    %p32 = scmp.eq.s32.totalorder %s13, 0
    %p33 = por %p31, %p32
    %p34 = scmp.ne.s32.totalorder %s23, %s26
    %p35 = scmp.eq.s32.totalorder %s18, 2
    %p36 = por %p34, %p35
    %p37 = scmp.ne.s32.totalorder %s26, %s27
    %p38 = scmp.eq.s32.totalorder %s18, 0
    %p39 = por %p37, %p38
    %p40 = scmp.ne.s32.totalorder %s26, %s27
    %p41 = scmp.eq.s32.totalorder %s19, 2
    %p42 = por %p40, %p41
    %p44 = scmp.ne.s32.totalorder %s27, %s43
    %p45 = scmp.eq.s32.totalorder %s19, 0
    %p46 = por %p44, %p45
    %s48 = sadd.s32 %s47, 1
    %p51 = scmp.eq.s32.totalorder %s13, 2
    %p52 = scmp.ne.s32.totalorder %s47, %s49
    %p53 = scmp.eq.s32.totalorder %s13, 0
    %p54 = por %p52, %p53
    %p55 = scmp.ne.s32.totalorder %s47, %s49
    %p56 = scmp.eq.s32.totalorder %s18, 2
    %p57 = por %p55, %p56
    %p58 = scmp.ne.s32.totalorder %s49, %s50
    %p59 = scmp.eq.s32.totalorder %s18, 0
    %p60 = por %p58, %p59
    %p61 = scmp.ne.s32.totalorder %s49, %s50
    %p62 = scmp.eq.s32.totalorder %s19, 2
    %p63 = por %p61, %p62
    %p65 = scmp.ne.s32.totalorder %s50, %s64
    %p66 = scmp.eq.s32.totalorder %s19, 0
    %p67 = por %p65, %p66
    %s69 = sadd.s32 %s68, 1
    %p72 = scmp.eq.s32.totalorder %s13, 2
    %p73 = scmp.ne.s32.totalorder %s68, %s70
    %p74 = scmp.eq.s32.totalorder %s13, 0
    %p75 = por %p73, %p74
    %p76 = scmp.ne.s32.totalorder %s68, %s70
    %p77 = scmp.eq.s32.totalorder %s18, 2
    %p78 = por %p76, %p77
    %p79 = scmp.ne.s32.totalorder %s70, %s71
    %p80 = scmp.eq.s32.totalorder %s18, 0
    %p81 = por %p79, %p80
    %p82 = scmp.ne.s32.totalorder %s70, %s71
    %p83 = scmp.eq.s32.totalorder %s19, 2
    %p84 = por %p82, %p83
    %p86 = scmp.ne.s32.totalorder %s71, %s85
    %p87 = scmp.eq.s32.totalorder %s19, 0
    %p88 = por %p86, %p87
    %s90 = sadd.s32 %s89, 1
    %p93 = scmp.eq.s32.totalorder %s13, 2
    %p94 = scmp.ne.s32.totalorder %s89, %s91
    %p95 = scmp.eq.s32.totalorder %s13, 0
    %p96 = por %p94, %p95
    %p97 = scmp.ne.s32.totalorder %s89, %s91
    %p98 = scmp.eq.s32.totalorder %s18, 2
    %p99 = por %p97, %p98
    %p100 = scmp.ne.s32.totalorder %s91, %s92
    %p101 = scmp.eq.s32.totalorder %s18, 0
    %p102 = por %p100, %p101
    %p103 = scmp.ne.s32.totalorder %s91, %s92
    %p104 = scmp.eq.s32.totalorder %s19, 2
    %p105 = por %p103, %p104
    %p107 = scmp.ne.s32.totalorder %s92, %s106
    %p108 = scmp.eq.s32.totalorder %s19, 0
    %p109 = por %p107, %p108
    %s111 = sadd.s32 %s110, 1
    %p114 = scmp.eq.s32.totalorder %s13, 2
    %p115 = scmp.ne.s32.totalorder %s110, %s112
    %p116 = scmp.eq.s32.totalorder %s13, 0
    %p117 = por %p115, %p116
    %p118 = scmp.ne.s32.totalorder %s110, %s112
    %p119 = scmp.eq.s32.totalorder %s18, 2
    %p120 = por %p118, %p119
    %p121 = scmp.ne.s32.totalorder %s112, %s113
    %p122 = scmp.eq.s32.totalorder %s18, 0
    %p123 = por %p121, %p122
    %p124 = scmp.ne.s32.totalorder %s112, %s113
    %p125 = scmp.eq.s32.totalorder %s19, 2
    %p126 = por %p124, %p125
    %p128 = scmp.ne.s32.totalorder %s113, %s127
    %p129 = scmp.eq.s32.totalorder %s19, 0
    %p130 = por %p128, %p129
    %s132 = sadd.s32 %s131, 1
    %p135 = scmp.eq.s32.totalorder %s13, 2
    %p136 = scmp.ne.s32.totalorder %s131, %s133
    %p137 = scmp.eq.s32.totalorder %s13, 0
    %p138 = por %p136, %p137
    %p139 = scmp.ne.s32.totalorder %s131, %s133
    %p140 = scmp.eq.s32.totalorder %s18, 2
    %p141 = por %p139, %p140
    %p142 = scmp.ne.s32.totalorder %s133, %s134
    %p143 = scmp.eq.s32.totalorder %s18, 0
    %p144 = por %p142, %p143
    %p145 = scmp.ne.s32.totalorder %s133, %s134
    %p146 = scmp.eq.s32.totalorder %s19, 2
    %p147 = por %p145, %p146
    %p149 = scmp.ne.s32.totalorder %s134, %s148
    %p150 = scmp.eq.s32.totalorder %s19, 0
    %p151 = por %p149, %p150
    %s153 = sadd.s32 %s152, 1
    %p156 = scmp.eq.s32.totalorder %s13, 2
    %p157 = scmp.ne.s32.totalorder %s152, %s154
    %p158 = scmp.eq.s32.totalorder %s13, 0
    %p159 = por %p157, %p158
    %p160 = scmp.ne.s32.totalorder %s152, %s154
    %p161 = scmp.eq.s32.totalorder %s18, 2
    %p162 = por %p160, %p161
    %p163 = scmp.ne.s32.totalorder %s154, %s155
    %p164 = scmp.eq.s32.totalorder %s18, 0
    %p165 = por %p163, %p164
    %p166 = scmp.ne.s32.totalorder %s154, %s155
    %p167 = scmp.eq.s32.totalorder %s19, 2
    %p168 = por %p166, %p167
    %p170 = scmp.ne.s32.totalorder %s155, %s169
    %p171 = scmp.eq.s32.totalorder %s19, 0
    %p172 = por %p170, %p171
    %s173 = ssub.s32 %s13, %s20
    %p174 = scmp.eq.s32.totalorder %s173, 0
    %s176 = sadd.s32 %s175, 1
    %s177 = scalar_select %p174, %s175, %s176
    %p180 = pneg %p174
    %p181 = scmp.eq.s32.totalorder %s13, 2
    %p182 = por %p180, %p181
    %p183 = scmp.ne.s32.totalorder %s175, %s178
    %p184 = scmp.eq.s32.totalorder %s13, 0
    %p185 = por %p183, %p184
    %p186 = scmp.ne.s32.totalorder %s175, %s178
    %p187 = scmp.eq.s32.totalorder %s18, 2
    %p188 = por %p186, %p187
    %p189 = scmp.ne.s32.totalorder %s178, %s179
    %p190 = scmp.eq.s32.totalorder %s18, 0
    %p191 = por %p189, %p190
    %p192 = scmp.ne.s32.totalorder %s178, %s179
    %p193 = scmp.eq.s32.totalorder %s19, 2
    %p194 = por %p192, %p193
    %p196 = scmp.ne.s32.totalorder %s179, %s195
    %p197 = scmp.eq.s32.totalorder %s19, 0
    %p198 = por %p196, %p197
    %p199 = scmp.le.s32.totalorder 1, %s13
    %p200 = scmp.lt.s32.totalorder %s13, 4
    %p201 = pnand %p199, %p200
    %p202 = pneg %p201
    // Predicated region
    $region9: #{tpu_custom_call.1} parent=5 // pred_check
      _
    $region10: #{tpu_custom_call.1} parent=5 // pred_check_branch
      %204 = sbr.rel (%p201) target = $region12
    $region11: #{tpu_custom_call.1} parent=5 // pred_region
      %s205 = ssub.s32 %s13, 1
      // Predicated region
      $region13: #{tpu_custom_call.1} parent=11 // pred_check
        %p206 = pneg %p60
      $region14: #{tpu_custom_call.1} parent=11 // pred_check_branch
        %208 = sbr.rel (%p206) target = $region16
      $region15: #{tpu_custom_call.1} parent=11 // pred_region
        _
      $region16: #{tpu_custom_call.1} parent=11 // pred_fallthru
        _
      // Predicated region
      $region17: #{tpu_custom_call.1} parent=11 // pred_check
        %p209 = pneg %p81
      $region18: #{tpu_custom_call.1} parent=11 // pred_check_branch
        %211 = sbr.rel (%p209) target = $region20
      $region19: #{tpu_custom_call.1} parent=11 // pred_region
        _
      $region20: #{tpu_custom_call.1} parent=11 // pred_fallthru
        _
      // Predicated region
      $region21: #{tpu_custom_call.1} parent=11 // pred_check
        %p212 = pneg %p102
      $region22: #{tpu_custom_call.1} parent=11 // pred_check_branch
        %214 = sbr.rel (%p212) target = $region24
      $region23: #{tpu_custom_call.1} parent=11 // pred_region
        _
      $region24: #{tpu_custom_call.1} parent=11 // pred_fallthru
        _
      // Predicated region
      $region25: #{tpu_custom_call.1} parent=11 // pred_check
        %p215 = pneg %p123
      $region26: #{tpu_custom_call.1} parent=11 // pred_check_branch
        %217 = sbr.rel (%p215) target = $region28
      $region27: #{tpu_custom_call.1} parent=11 // pred_region
        _
      $region28: #{tpu_custom_call.1} parent=11 // pred_fallthru
        _
      // Predicated region
      $region29: #{tpu_custom_call.1} parent=11 // pred_check
        %p218 = pneg %p144
      $region30: #{tpu_custom_call.1} parent=11 // pred_check_branch
        %220 = sbr.rel (%p218) target = $region32
      $region31: #{tpu_custom_call.1} parent=11 // pred_region
        _
      $region32: #{tpu_custom_call.1} parent=11 // pred_fallthru
        _
      // Predicated region
      $region33: #{tpu_custom_call.1} parent=11 // pred_check
        %p221 = pneg %p165
      $region34: #{tpu_custom_call.1} parent=11 // pred_check_branch
        %223 = sbr.rel (%p221) target = $region36
      $region35: #{tpu_custom_call.1} parent=11 // pred_region
        _
      $region36: #{tpu_custom_call.1} parent=11 // pred_fallthru
        _
    $region12: #{tpu_custom_call.1} parent=5 // pred_fallthru
      _
    %p224 = scmp.lt.s32.totalorder %s13, 3
    // Predicated region
    $region37: #{tpu_custom_call.1} parent=5 // pred_check
      %p225 = pneg %p224
    $region38: #{tpu_custom_call.1} parent=5 // pred_check_branch
      %227 = sbr.rel (%p225) target = $region40
    $region39: #{tpu_custom_call.1} parent=5 // pred_region
      // Predicated region
      $region41: #{tpu_custom_call.1} parent=39 // pred_check
        %p228 = pneg %p33
      $region42: #{tpu_custom_call.1} parent=39 // pred_check_branch
        %230 = sbr.rel (%p228) target = $region44
      $region43: #{tpu_custom_call.1} parent=39 // pred_region
        %p231 = scmp.lt.s32.totalorder %s13, 2
        %s232 = scalar_select %p231, %s13, 2
        %s233 = smul.addr %s232, 4
        %s234 = scalar_lea.vmem %s0, %s233
      $region44: #{tpu_custom_call.1} parent=39 // pred_fallthru
        _
    $region40: #{tpu_custom_call.1} parent=5 // pred_fallthru
      _
    %p235 = scmp.le.s32.totalorder 1, %s13
    %p236 = scmp.lt.s32.totalorder %s13, 4
    %p237 = pnand %p235, %p236
    %p238 = pneg %p237
    // Predicated region
    $region45: #{tpu_custom_call.1} parent=5 // pred_check
      _
    $region46: #{tpu_custom_call.1} parent=5 // pred_check_branch
      %240 = sbr.rel (%p237) target = $region48
    $region47: #{tpu_custom_call.1} parent=5 // pred_region
      %s241 = ssub.s32 %s13, 1
      %p242 = scmp.lt.s32.totalorder %s18, 2
      %s243 = scalar_select %p242, %s18, 2
      %s244 = smul.addr %s243, 4
      %s245 = scalar_lea.vmem %s0, %s244
      %p246 = pneg %p39
      %p247 = pneg %p36
      %p248 = pneg %p60
      %p249 = pneg %p57
      %p250 = pneg %p81
      %p251 = pneg %p78
      %p252 = pneg %p102
      %p253 = pneg %p99
      %p254 = pneg %p123
      %p255 = pneg %p120
      %p256 = pneg %p144
      %p257 = pneg %p141
      %p258 = pneg %p165
      %p259 = pneg %p162
      %p260 = pneg %p191
      %p261 = pneg %p188
      %p262 = scmp.lt.s32.totalorder %s18, 2
      %s263 = scalar_select %p262, %s18, 2
      %s264 = smul.addr %s263, 8
      %s265 = scalar_lea.vmem %s7, %s264
      %p266 = scmp.lt.s32.totalorder %s18, 2
      %s267 = scalar_select %p266, %s18, 2
      %s268 = smul.addr %s267, 4
      %s269 = scalar_lea.vmem %s0, %s268
      %p270 = scmp.lt.s32.totalorder %s18, 2
      %s271 = scalar_select %p270, %s18, 2
      %s272 = smul.addr %s271, 8
      %s273 = scalar_lea.vmem %s7, %s272
      %v275 = vld [vmem:[%s269] sm:$0xf]
      %v276 = vld [vmem:[%s1] sm:$0xf]
      %v277 = vld [vmem:[%s1 + $0x4] sm:$0xf]
      %v278 = vld [vmem:[%s2] sm:$0x1]
      %v280 = vlaneseq
      %v281 = vshrl.u32 %v280, 7
      %v282 = vsub.s32 0, %v281
      %v283 = vrot.slane %v278, %v282
      %v287 = vunpack.c.l.b16 %v276
      %v288 = vunpack.c.l.b16 %v277
      %v289 = vpack.c.b16 %v288, %v287
      %vm291 = vcmask 130048
      %v293 = vsel %vm291, %v275, 0
      %295 = vmatprep.subr.bf16.mxu0 0
      %296 = vmatpush1.bf16.msra.mxu0 %v289
      %297 = vmatprep.subr.bf16.mxu0 0
      %298 = vmatpush1.bf16.msra.mxu0 0
      %299 = vmatprep.subr.bf16.mxu0 0
      %300 = vmatpush1.bf16.msra.mxu0 0
      %301 = vmatprep.subr.bf16.mxu0 0
      %302 = vmatpush1.bf16.msra.mxu0 0
      %303 = vmatprep.subr.bf16.mxu0 0
      %304 = vmatpush1.bf16.msra.mxu0 0
      %305 = vmatprep.subr.bf16.mxu0 0
      %306 = vmatpush1.bf16.msra.mxu0 0
      %307 = vmatprep.subr.bf16.mxu0 0
      %308 = vmatpush1.bf16.msra.mxu0 0
      %309 = vmatprep.subr.bf16.mxu0 0
      %310 = vmatpush1.bf16.msra.mxu0 0
      %311 = vmatprep.subr.bf16.mxu0 0
      %312 = vmatpush1.bf16.msra.mxu0 0
      %313 = vmatprep.subr.bf16.mxu0 0
      %314 = vmatpush1.bf16.msra.mxu0 0
      %315 = vmatprep.subr.bf16.mxu0 0
      %316 = vmatpush1.bf16.msra.mxu0 0
      %317 = vmatprep.subr.bf16.mxu0 0
      %318 = vmatpush1.bf16.msra.mxu0 0
      %319 = vmatprep.subr.bf16.mxu0 0
      %320 = vmatpush1.bf16.msra.mxu0 0
      %321 = vmatprep.subr.bf16.mxu0 0
      %322 = vmatpush1.bf16.msra.mxu0 0
      %323 = vmatprep.subr.bf16.mxu0 0
      %324 = vmatpush1.bf16.msra.mxu0 0
      %325 = vmatprep.subr.bf16.mxu0 0
      %326 = vmatpush1.bf16.msra.mxu0 0
      %327 = vmatprep.mubr.bf16.mxu0 0
      %328 = vmatmul.mubr.bf16.gmra.mrb[0].mxu0 %v293
      %v329 = vpop.f32.mrb[0].mxu0
      %v330 = vadd.f32 %v283, %v329
      %v331 = vpop.f32.mrb[0].mxu0
      %v332 = vpop.f32.mrb[0].mxu0
      %v333 = vpop.f32.mrb[0].mxu0
      %334 = vdwg.mxu0
      %v335 = vtanh.pop %v330
      %v336 = vpack.c.bf16 %v335, %v335
      %v337 = vld [vmem:[%s3] sm:$0xf]
      %v338 = vld [vmem:[%s3 + $0x4] sm:$0xf]
      %v339 = vld [vmem:[%s3 + $0x8] sm:$0xf]
      %v340 = vld [vmem:[%s3 + $0xc] sm:$0xf]
      %v341 = vld [vmem:[%s4] sm:$0x1]
      %v343 = vlaneseq
      %v344 = vshrl.u32 %v343, 7
      %v345 = vsub.s32 0, %v344
      %v346 = vrot.slane %v341, %v345
      %v352 = vunpack.c.l.b16 %v337
      %v353 = vunpack.c.l.b16 %v338
      %v354 = vunpack.c.l.b16 %v339
      %v355 = vunpack.c.l.b16 %v340
      %v356 = vpack.c.b16 %v353, %v352
      %v357 = vpack.c.b16 %v355, %v354
      %vm360 = vcmask 261120
      %v362 = vsel %vm360, %v336, 0
      %364 = vmatprep.subr.bf16.mxu0 0
      %365 = vmatpush1.bf16.msra.mxu0 %v356
      %366 = vmatprep.subr.bf16.mxu0 0
      %367 = vmatpush1.bf16.msra.mxu0 %v357
      %368 = vmatprep.subr.bf16.mxu0 0
      %369 = vmatpush1.bf16.msra.mxu0 0
      %370 = vmatprep.subr.bf16.mxu0 0
      %371 = vmatpush1.bf16.msra.mxu0 0
      %372 = vmatprep.subr.bf16.mxu0 0
      %373 = vmatpush1.bf16.msra.mxu0 0
      %374 = vmatprep.subr.bf16.mxu0 0
      %375 = vmatpush1.bf16.msra.mxu0 0
      %376 = vmatprep.subr.bf16.mxu0 0
      %377 = vmatpush1.bf16.msra.mxu0 0
      %378 = vmatprep.subr.bf16.mxu0 0
      %379 = vmatpush1.bf16.msra.mxu0 0
      %380 = vmatprep.subr.bf16.mxu0 0
      %381 = vmatpush1.bf16.msra.mxu0 0
      %382 = vmatprep.subr.bf16.mxu0 0
      %383 = vmatpush1.bf16.msra.mxu0 0
      %384 = vmatprep.subr.bf16.mxu0 0
      %385 = vmatpush1.bf16.msra.mxu0 0
      %386 = vmatprep.subr.bf16.mxu0 0
      %387 = vmatpush1.bf16.msra.mxu0 0
      %388 = vmatprep.subr.bf16.mxu0 0
      %389 = vmatpush1.bf16.msra.mxu0 0
      %390 = vmatprep.subr.bf16.mxu0 0
      %391 = vmatpush1.bf16.msra.mxu0 0
      %392 = vmatprep.subr.bf16.mxu0 0
      %393 = vmatpush1.bf16.msra.mxu0 0
      %394 = vmatprep.subr.bf16.mxu0 0
      %395 = vmatpush1.bf16.msra.mxu0 0
      %396 = vmatprep.mubr.bf16.mxu0 0
      %397 = vmatmul.mubr.bf16.gmra.mrb[0].mxu0 %v362
      %v398 = vpop.f32.mrb[0].mxu0
      %v399 = vadd.f32 %v346, %v398
      %v400 = vpop.f32.mrb[0].mxu0
      %v401 = vpop.f32.mrb[0].mxu0
      %v402 = vpop.f32.mrb[0].mxu0
      %403 = vdwg.mxu0
      %v404 = vtanh.pop %v399
      %v405 = vpack.c.bf16 %v404, %v404
      %v406 = vld [vmem:[%s5] sm:$0xf]
      %v407 = vld [vmem:[%s5 + $0x4] sm:$0xf]
      %v408 = vld [vmem:[%s5 + $0x8] sm:$0xf]
      %v409 = vld [vmem:[%s5 + $0xc] sm:$0xf]
      %v410 = vld [vmem:[%s6] sm:$0x1]
      %v412 = vlaneseq
      %v413 = vshrl.u32 %v412, 7
      %v414 = vsub.s32 0, %v413
      %v415 = vrot.slane %v410, %v414
      %v421 = vunpack.c.l.b16 %v406
      %v422 = vunpack.c.l.b16 %v407
      %v423 = vunpack.c.l.b16 %v408
      %v424 = vunpack.c.l.b16 %v409
      %v425 = vpack.c.b16 %v422, %v421
      %v426 = vpack.c.b16 %v424, %v423
      %v430 = vsel %vm360, %v405, 0
      %432 = vmatprep.subr.bf16.mxu0 0
      %433 = vmatpush1.bf16.msra.mxu0 %v425
      %434 = vmatprep.subr.bf16.mxu0 0
      %435 = vmatpush1.bf16.msra.mxu0 %v426
      %436 = vmatprep.subr.bf16.mxu0 0
      %437 = vmatpush1.bf16.msra.mxu0 0
      %438 = vmatprep.subr.bf16.mxu0 0
      %439 = vmatpush1.bf16.msra.mxu0 0
      %440 = vmatprep.subr.bf16.mxu0 0
      %441 = vmatpush1.bf16.msra.mxu0 0
      %442 = vmatprep.subr.bf16.mxu0 0
      %443 = vmatpush1.bf16.msra.mxu0 0
      %444 = vmatprep.subr.bf16.mxu0 0
      %445 = vmatpush1.bf16.msra.mxu0 0
      %446 = vmatprep.subr.bf16.mxu0 0
      %447 = vmatpush1.bf16.msra.mxu0 0
      %448 = vmatprep.subr.bf16.mxu0 0
      %449 = vmatpush1.bf16.msra.mxu0 0
      %450 = vmatprep.subr.bf16.mxu0 0
      %451 = vmatpush1.bf16.msra.mxu0 0
      %452 = vmatprep.subr.bf16.mxu0 0
      %453 = vmatpush1.bf16.msra.mxu0 0
      %454 = vmatprep.subr.bf16.mxu0 0
      %455 = vmatpush1.bf16.msra.mxu0 0
      %456 = vmatprep.subr.bf16.mxu0 0
      %457 = vmatpush1.bf16.msra.mxu0 0
      %458 = vmatprep.subr.bf16.mxu0 0
      %459 = vmatpush1.bf16.msra.mxu0 0
      %460 = vmatprep.subr.bf16.mxu0 0
      %461 = vmatpush1.bf16.msra.mxu0 0
      %462 = vmatprep.subr.bf16.mxu0 0
      %463 = vmatpush1.bf16.msra.mxu0 0
      %464 = vmatprep.mubr.bf16.mxu0 0
      %465 = vmatmul.mubr.bf16.gmra.mrb[0].mxu0 %v430
      %v466 = vpop.f32.mrb[0].mxu0
      %v467 = vadd.f32 %v415, %v466
      %v468 = vpop.f32.mrb[0].mxu0
      %v469 = vpop.f32.mrb[0].mxu0
      %v470 = vpop.f32.mrb[0].mxu0
      %471 = vdwg.mxu0
      %vm472 = vcmask 31744
      %473 = vst.msk [vmem:[%s273] sm:$0xff] %vm472, %v467
      %p474 = scmp.lt.s32.totalorder %s18, 2
      %s475 = scalar_select %p474, %s18, 2
      %s476 = smul.addr %s475, 8
      %s477 = scalar_lea.vmem %s7, %s476
      // Predicated region
      $region49: #{tpu_custom_call.1} parent=47 // pred_check
        %p478 = pneg %p188
      $region50: #{tpu_custom_call.1} parent=47 // pred_check_branch
        %480 = sbr.rel (%p478) target = $region52
      $region51: #{tpu_custom_call.1} parent=47 // pred_region
        _
      $region52: #{tpu_custom_call.1} parent=47 // pred_fallthru
        _
    $region48: #{tpu_custom_call.1} parent=5 // pred_fallthru
      _
    %p481 = scmp.le.s32.totalorder 2, %s13
    // Predicated region
    $region53: #{tpu_custom_call.1} parent=5 // pred_check
      %p482 = pneg %p481
    $region54: #{tpu_custom_call.1} parent=5 // pred_check_branch
      %484 = sbr.rel (%p482) target = $region56
    $region55: #{tpu_custom_call.1} parent=5 // pred_region
      %s485 = ssub.s32 %s13, 2
      // Predicated region
      $region57: #{tpu_custom_call.1} parent=55 // pred_check
        %p486 = pneg %p194
      $region58: #{tpu_custom_call.1} parent=55 // pred_check_branch
        %488 = sbr.rel (%p486) target = $region60
      $region59: #{tpu_custom_call.1} parent=55 // pred_region
        %p489 = scmp.lt.s32.totalorder %s19, 2
        %s490 = scalar_select %p489, %s19, 2
        %s491 = smul.addr %s490, 8
        %s492 = scalar_lea.vmem %s7, %s491
      $region60: #{tpu_custom_call.1} parent=55 // pred_fallthru
        _
    $region56: #{tpu_custom_call.1} parent=5 // pred_fallthru
      _
  $region6: #{tpu_custom_call.1} parent=0 // loop_footer
    %s17 = sadd.s32 1, %s13
  $region7: #{tpu_custom_call.1} parent=0 // loop_footer_branch
    %12 = sbr.rel target = $region3
  $region8: #{tpu_custom_call.1} parent=0 // loop_exit
    _

</llo_original>
